<compile_context>
chip_gen: v6e
topology: v6e:2x2x1
jax: 0.10.0
libtpu: 0.0.40
codegen_flags: <defaults>
</compile_context>

<pallas_src>
import functools
import math

import jax
import jax.numpy as jnp
from jax.experimental import pallas as pl
from jax.experimental.pallas import tpu as pltpu


def make_pe_table(max_len: int, d_model: int, dtype=jnp.float32):
    """Deterministic sin/cos positional-encoding table, shape (max_len, d_model)."""
    position = jnp.arange(max_len, dtype=jnp.float32)[:, None]            # (L, 1)
    div_term = jnp.exp(
        jnp.arange(0, d_model, 2, dtype=jnp.float32) * (-math.log(10000.0) / d_model)
    )                                                                     # (D/2,)
    ang = position * div_term                                             # (L, D/2)
    pe = jnp.zeros((max_len, d_model), jnp.float32)
    pe = pe.at[:, 0::2].set(jnp.sin(ang))
    pe = pe.at[:, 1::2].set(jnp.cos(ang))
    return pe.astype(dtype)


def _broadcast_pe(pe_row, batch):
    """(block_s, D) -> (block_s, B*D): on-chip replication, hides under DMA."""
    if batch == 1:
        return pe_row
    return jnp.concatenate([pe_row] * batch, axis=-1)


def _pe_add_kernel(x_ref, pe_ref, o_ref, *, batch):
    # Compute in f32 (cheap; keeps v5e's VALU happy for bf16 inputs), store in x dtype.
    y = x_ref[...].astype(jnp.float32) + _broadcast_pe(
        pe_ref[...].astype(jnp.float32), batch)
    o_ref[...] = y.astype(o_ref.dtype)


def _pe_dropout_hwprng_kernel(seed_ref, x_ref, pe_ref, o_ref, *,
                              batch, threshold, scale):
    # TPU hardware PRNG: no HBM traffic for the dropout mask.
    y = x_ref[...].astype(jnp.float32) + _broadcast_pe(
        pe_ref[...].astype(jnp.float32), batch)
    pltpu.prng_seed(seed_ref[0], pl.program_id(0))      # per-block independent stream
    bits = pltpu.bitcast(pltpu.prng_random_bits(y.shape), jnp.uint32)
    keep = bits >= jnp.uint32(threshold)                # P(keep) = 1 - p
    o_ref[...] = jnp.where(keep, y * jnp.float32(scale), 0.0).astype(o_ref.dtype)


def _pe_dropout_bits_kernel(x_ref, pe_ref, bits_ref, o_ref, *,
                            batch, threshold, scale):
    # Portable path: random bits precomputed outside the kernel (interpret mode / CPU).
    y = x_ref[...].astype(jnp.float32) + _broadcast_pe(
        pe_ref[...].astype(jnp.float32), batch)
    keep = bits_ref[...] >= jnp.uint32(threshold)       # P(keep) = 1 - p
    o_ref[...] = jnp.where(keep, y * jnp.float32(scale), 0.0).astype(o_ref.dtype)


def _choose_block_s(S, row_bytes, target_bytes=1 << 20):
    """Pick a seq-tile so each x/out tile is ~<=1 MiB (pipelined, v7x-VMEM-safe)."""
    if S <= 8 or S * row_bytes <= target_bytes:
        return S                       # whole array is one comfortable tile
    bs = max(8, ((target_bytes // max(1, row_bytes)) // 8) * 8)   # multiple of 8
    return min(bs, S)


def positional_encoding_forward(x, pe_table, *, p=0.1, train=True, seed=0,
                                block_s=None):
    """x: [S, B, D] -> [S, B, D], matching PositionalEncoding.forward."""
    S, B, D = x.shape
    dtype = x.dtype
    x2 = x.reshape(S, B * D)                      # free reshape -> lane-dense layout
    pe = pe_table[:S].astype(dtype)               # (S, D): NOT pre-tiled over batch

    itemsize = jnp.dtype(dtype).itemsize
    if block_s is None:
        block_s = _choose_block_s(S, B * D * itemsize)
    grid = (pl.cdiv(S, block_s),)

    compiler_params = pltpu.CompilerParams(
        dimension_semantics=("parallel",),        # independent blocks -> 2 TCs on v7x
        vmem_limit_bytes=32 * 1024 * 1024,        # headroom vs v7x's 64 MiB VMEM
    )
    out_shape = jax.ShapeDtypeStruct((S, B * D), dtype)
    x_spec = pl.BlockSpec((block_s, B * D), lambda i: (i, 0))
    pe_spec = pl.BlockSpec((block_s, D), lambda i: (i, 0))
    o_spec = pl.BlockSpec((block_s, B * D), lambda i: (i, 0))

    apply_dropout = bool(train) and p > 0.0

    if not apply_dropout:
        # Eval / p=0: pure x + pe add, 2-read-1-write stream, no PRNG anywhere.
        out2 = pl.pallas_call(
            functools.partial(_pe_add_kernel, batch=B),
            out_shape=out_shape,
            grid=grid,
            in_specs=[x_spec, pe_spec],
            out_specs=o_spec,
            compiler_params=compiler_params,
        )(x2, pe)
    else:
        # keep iff bits >= threshold, threshold = p * 2^32 (tiny quantization of p).
        threshold = min(int(p * 4294967296.0), 4294967295)
        scale = 1.0 / (1.0 - p)
        if jax.default_backend() == "tpu":
            seeds = jnp.asarray([seed], dtype=jnp.int32)
            out2 = pl.pallas_call(
                functools.partial(_pe_dropout_hwprng_kernel, batch=B,
                                  threshold=threshold, scale=scale),
                out_shape=out_shape,
                grid_spec=pltpu.PrefetchScalarGridSpec(
                    num_scalar_prefetch=1,        # seed -> SMEM
                    grid=grid,
                    in_specs=[pl.BlockSpec((block_s, B * D), lambda i, s: (i, 0)),
                              pl.BlockSpec((block_s, D), lambda i, s: (i, 0))],
                    out_specs=pl.BlockSpec((block_s, B * D), lambda i, s: (i, 0))),
                compiler_params=compiler_params,
            )(seeds, x2, pe)
        else:
            # TODO(synk): PyTorch's exact dropout RNG stream is not reproducible;
            # off-TPU, pltpu.prng_* has no lowering, so stream in counter-based bits.
            bits = jax.random.bits(jax.random.PRNGKey(seed), (S, B * D),
                                   dtype=jnp.uint32)
            out2 = pl.pallas_call(
                functools.partial(_pe_dropout_bits_kernel, batch=B,
                                  threshold=threshold, scale=scale),
                out_shape=out_shape,
                grid=grid,
                in_specs=[x_spec, pe_spec,
                          pl.BlockSpec((block_s, B * D), lambda i: (i, 0))],
                out_specs=o_spec,
                compiler_params=compiler_params,
            )(x2, pe, bits)

    return out2.reshape(S, B, D)


if __name__ == "__main__":
    # Small shapes consistent with the module: [seq_len, batch, d_model]
    S, B, D = 8, 2, 32
    MAX_LEN = 64

    key = jax.random.PRNGKey(0)
    x = jax.random.normal(key, (S, B, D), dtype=jnp.float32)
    pe_table = make_pe_table(MAX_LEN, D)

    ref = x + pe_table[:S][:, None, :]

    # 1) eval mode (dropout disabled) -> deterministic, must match reference.
    out_eval = jax.block_until_ready(
        positional_encoding_forward(x, pe_table, p=0.1, train=False))
    assert out_eval.shape == (S, B, D)
    assert jnp.allclose(out_eval, ref, atol=1e-6, rtol=1e-6), "eval-mode mismatch"

    # 2) train mode (dropout p=0.1): kept elements must equal (x + pe) / (1 - p).
    p = 0.1
    out_train = jax.block_until_ready(
        positional_encoding_forward(x, pe_table, p=p, train=True, seed=1234))
    assert out_train.shape == (S, B, D)
    assert bool(jnp.all(jnp.isfinite(out_train)))
    scaled = ref / (1.0 - p)
    recon = jnp.where(out_train != 0, out_train, scaled)
    assert jnp.allclose(recon, scaled, atol=1e-5, rtol=1e-5), "train-mode scaling mismatch"

    print("KERNEL_OK")
</pallas_src>

<mosaic_0001>
module attributes {stable_mosaic.version = 11 : i64} {
  func.func @_pe_add_kernel(%arg0: i32, %arg1: memref<8x64xf32, #tpu.memory_space<vmem>>, %arg2: memref<8x32xf32, #tpu.memory_space<vmem>>, %arg3: memref<8x64xf32, #tpu.memory_space<vmem>>) attributes {dimension_semantics = [#tpu.dimension_semantics<parallel>], iteration_bounds = array<i64: 1>, scalar_prefetch = 0 : i64, scratch_operands = 0 : i64, tpu.core_type = #tpu.core_type<tc>, window_params = [{transform_indices = @transform_0, window_bounds = array<i64: 8, 64>}, {transform_indices = @transform_1, window_bounds = array<i64: 8, 32>}, {transform_indices = @transform_2, window_bounds = array<i64: 8, 64>}]} {
    %c0 = arith.constant 0 : index
    %c0_0 = arith.constant 0 : index
    %0 = vector.load %arg1[%c0, %c0_0] : memref<8x64xf32, #tpu.memory_space<vmem>>, vector<8x64xf32>
    %c0_1 = arith.constant 0 : index
    %c0_2 = arith.constant 0 : index
    %1 = vector.load %arg2[%c0_1, %c0_2] : memref<8x32xf32, #tpu.memory_space<vmem>>, vector<8x32xf32>
    %2 = tpu.concatenate %1, %1 in 1 : vector<8x32xf32>, vector<8x32xf32> -> vector<8x64xf32>
    %3 = arith.addf %0, %2 : vector<8x64xf32>
    %c0_3 = arith.constant 0 : index
    %c0_4 = arith.constant 0 : index
    %4 = vector.load %arg3[%c0_3, %c0_4] : memref<8x64xf32, #tpu.memory_space<vmem>>, vector<8x64xf32>
    tpu.vector_store %arg3[%c0_3, %c0_4], %3 {strides = array<i32>} : memref<8x64xf32, #tpu.memory_space<vmem>>, vector<8x64xf32>,
    return
  }
  func.func @transform_0(%arg0: i32) -> (i32, i32) {
    %c0_i32 = arith.constant 0 : i32
    %c0_i32_0 = arith.constant 0 : i32
    return %arg0, %c0_i32 : i32, i32
  }
  func.func @transform_1(%arg0: i32) -> (i32, i32) {
    %c0_i32 = arith.constant 0 : i32
    %c0_i32_0 = arith.constant 0 : i32
    return %arg0, %c0_i32 : i32, i32
  }
  func.func @transform_2(%arg0: i32) -> (i32, i32) {
    %c0_i32 = arith.constant 0 : i32
    %c0_i32_0 = arith.constant 0 : i32
    return %arg0, %c0_i32 : i32, i32
  }
}

</mosaic_0001>

<llo_original>
// kernel: tpu_custom_call.1
$region0: #{tpu_custom_call.1}
  #allocation0 [shape = 'u32[]', space=smem, size = 0x4, offset = 0x4, fixed_abs, tag = 'smem constant byte address 0x4 - core index']
  #allocation1 [shape = 'u32[144,128]{1,0:T(1,128)}', space=vmem, size = 0x12000, scoped, tag = 'internal scratch']
  %s0 = inlined_call_operand.hbm [shape: f32[8,64], index: 0, kind: input, shape index: {}]
  %s1 = inlined_call_operand.hbm [shape: f32[8,32], index: 1, kind: input, shape index: {}]
  %s2 = inlined_call_operand.hbm [shape: f32[8,64], index: 2, kind: output, shape index: {}]
  %s3 = sld [smem:[#allocation0]]
  $region26: #{tpu_custom_call.1} parent=0
    _
  %s5 = ssub.s32 1, %s3
  %s6 = scalar_select 0, %s5, %s3
  $region1: #{tpu_custom_call.1} parent=0
    #allocation2 [shape = 'u8[4096]{0}', space=vmem, size = 0x1000, scoped, tag = 'input window, operand 0, single buffered']
    #allocation3 [shape = 's32[1]{0}', space=sflag, size = 0x4, scoped, tag = 'scoped memory for tpu_custom_call.1']
    #allocation4 [shape = 's32[1]{0}', space=sflag, size = 0x4, scoped, tag = 'scoped memory for tpu_custom_call.1']
    #allocation5 [shape = 'u8[4096]{0}', space=vmem, size = 0x1000, scoped, tag = 'input window, operand 1, single buffered']
    #allocation6 [shape = 's32[1]{0}', space=sflag, size = 0x4, scoped, tag = 'scoped memory for tpu_custom_call.1']
    #allocation7 [shape = 'u8[4096]{0}', space=vmem, size = 0x1000, scoped, tag = 'output window, operand 0, single buffered']
    %7 = vsyncpa [#allocation3], 0
    %8 = vsyncpa [#allocation6], 0
    %9 = vsyncpa [#allocation4], 0
    // Predicated region
    $region2: #{tpu_custom_call.1} parent=1 // pred_check
      _
    $region3: #{tpu_custom_call.1} parent=1 // pred_check_branch
      %11 = sbr.rel (0) target = $region5
    $region4: #{tpu_custom_call.1} parent=1 // pred_region
      %s13 = ssub.s32 128, 128
      %14 = vsyncadd [#allocation3], %s13
      %s16 = sshll.u32 [#allocation2], 4
      %s17 = int_to_ptr.vmem [resolvable:$true] %s16
      %19 = dma.hbm_to_vmem [thread:$0]  %s0, 128, %s17, [#allocation3]
    $region5: #{tpu_custom_call.1} parent=1 // pred_fallthru
      _
    // Predicated region
    $region6: #{tpu_custom_call.1} parent=1 // pred_check
      _
    $region7: #{tpu_custom_call.1} parent=1 // pred_check_branch
      %21 = sbr.rel (0) target = $region9
    $region8: #{tpu_custom_call.1} parent=1 // pred_region
      %s23 = ssub.s32 128, 128
      %24 = vsyncadd [#allocation6], %s23
      %s26 = sshll.u32 [#allocation5], 4
      %s27 = int_to_ptr.vmem [resolvable:$true] %s26
      %29 = dma.hbm_to_vmem [thread:$0]  %s1, 128, %s27, [#allocation6]
    $region9: #{tpu_custom_call.1} parent=1 // pred_fallthru
      _
    // Predicated region
    $region10: #{tpu_custom_call.1} parent=1 // pred_check
      _
    $region11: #{tpu_custom_call.1} parent=1 // pred_check_branch
      %31 = sbr.rel (0) target = $region13
    $region12: #{tpu_custom_call.1} parent=1 // pred_region
      %32 = dma.done [#allocation3], 128
    $region13: #{tpu_custom_call.1} parent=1 // pred_fallthru
      _
    // Predicated region
    $region14: #{tpu_custom_call.1} parent=1 // pred_check
      _
    $region15: #{tpu_custom_call.1} parent=1 // pred_check_branch
      %34 = sbr.rel (0) target = $region17
    $region16: #{tpu_custom_call.1} parent=1 // pred_region
      %35 = dma.done [#allocation6], 128
    $region17: #{tpu_custom_call.1} parent=1 // pred_fallthru
      _
    %v36 = vld [vmem:[#allocation2] sm:$0xff]
    %v37 = vld [vmem:[#allocation5] sm:$0xff]
    %39 = vrot.lane.b32.xlu0 %v37, 32
    %v40 = vpop.permute.xlu0 %39
    %vm42 = vcmask 261120
    %v43 = vsel %vm42, %v37, %v40
    %v44 = vadd.f32 %v36, %v43
    %vm45 = vcmask 523264
    %46 = vst.msk [vmem:[#allocation7] sm:$0xff] %vm45, %v44
    // Predicated region
    $region18: #{tpu_custom_call.1} parent=1 // pred_check
      _
    $region19: #{tpu_custom_call.1} parent=1 // pred_check_branch
      %48 = sbr.rel (0) target = $region21
    $region20: #{tpu_custom_call.1} parent=1 // pred_region
      %s50 = ssub.s32 128, 128
      %51 = vsyncadd [#allocation4], %s50
      %s53 = sshll.u32 [#allocation7], 4
      %s54 = int_to_ptr.vmem [resolvable:$true] %s53
      %56 = dma.vmem_to_hbm [thread:$0]  %s54, 128, %s2, [#allocation4]
    $region21: #{tpu_custom_call.1} parent=1 // pred_fallthru
      _
    // Predicated region
    $region22: #{tpu_custom_call.1} parent=1 // pred_check
      _
    $region23: #{tpu_custom_call.1} parent=1 // pred_check_branch
      %58 = sbr.rel (0) target = $region25
    $region24: #{tpu_custom_call.1} parent=1 // pred_region
      %59 = dma.done [#allocation4], 128
    $region25: #{tpu_custom_call.1} parent=1 // pred_fallthru
      _
    %60 = vsyncpa [#allocation3], 1
    %61 = vsyncpa [#allocation6], 1
    %62 = vsyncpa [#allocation4], 1

</llo_original>
